<compile_context>
chip_gen: v7x
topology: tpu7x:2x2x1
jax: 0.10.0
libtpu: 0.0.40
codegen_flags: <defaults>
</compile_context>

<pallas_src>
import jax
import jax.numpy as jnp
from jax.experimental import pallas as pl
from jax.experimental.pallas import tpu as pltpu


def _round_up(x: int, m: int) -> int:
    return ((x + m - 1) // m) * m


def actor_kernel(x_ref, noise_ref, w1_ref, b1_ref, w2_ref, b2_ref,
                 w3_ref, b3_ref, out_ref):
    # fc1 + relu
    h1 = jnp.dot(x_ref[...], w1_ref[...], preferred_element_type=jnp.float32)
    h1 = jnp.maximum(h1 + b1_ref[...], 0.0)

    # fc2 + relu
    h2 = jnp.dot(h1, w2_ref[...], preferred_element_type=jnp.float32)
    h2 = jnp.maximum(h2 + b2_ref[...], 0.0)

    # Additive Gaussian exploration noise (pre-scaled in the wrapper).
    h2 = h2 + noise_ref[...]

    # fc3 -> abs -> L1 normalize along feature axis (PyTorch dim=1).
    # Padded action lanes have zero weight/bias, so they contribute 0 to the
    # denominator and are sliced off outside the kernel.
    logits = jnp.dot(h2, w3_ref[...], preferred_element_type=jnp.float32)
    a = jnp.abs(logits + b3_ref[...])
    denom = jnp.maximum(jnp.sum(a, axis=-1, keepdims=True), 1e-12)  # F.normalize eps
    out_ref[...] = (a / denom).astype(out_ref.dtype)


def actor_forward(x, params, noise_key=None, noise_scale=0.1, batch_tile=512):
    w1, b1, w2, b2, w3, b3 = params
    B, S = x.shape
    H1 = w1.shape[1]
    H2 = w2.shape[1]
    A = w3.shape[1]

    # Lane-dense output: pad action dim to a multiple of 128 with zero
    # weight columns / zero bias entries (L1 denominator is unaffected).
    A_pad = _round_up(A, 128)
    if A_pad != A:
        w3 = jnp.pad(w3, ((0, 0), (0, A_pad - A)))
        b3 = jnp.pad(b3, ((0, 0), (0, A_pad - A)))

    # Batch tiling (sublane-aligned); pad batch so it divides evenly.
    TB = min(batch_tile, _round_up(B, 8))
    B_pad = _round_up(B, TB)
    if B_pad != B:
        x = jnp.pad(x, ((0, B_pad - B), (0, 0)))

    # Exploration noise, generated once in the wrapper (portable across
    # TPU / interpret mode, unlike the in-kernel hardware PRNG).
    if noise_scale != 0.0 and noise_key is not None:
        noise = jax.random.normal(noise_key, (B_pad, H2), jnp.float32) * noise_scale
    else:
        noise = jnp.zeros((B_pad, H2), jnp.float32)

    grid = (B_pad // TB,)
    tiled = lambda shape: pl.BlockSpec(shape, lambda i: (i, 0))       # batch-tiled
    resident = lambda shape: pl.BlockSpec(shape, lambda i: (0, 0))    # VMEM-resident

    out = pl.pallas_call(
        actor_kernel,
        out_shape=jax.ShapeDtypeStruct((B_pad, A_pad), jnp.float32),
        grid=grid,
        in_specs=[
            tiled((TB, S)),                          # x
            tiled((TB, H2)),                         # noise
            resident((S, H1)), resident((1, H1)),    # fc1
            resident((H1, H2)), resident((1, H2)),   # fc2
            resident((H2, A_pad)), resident((1, A_pad)),  # fc3 (padded)
        ],
        out_specs=tiled((TB, A_pad)),
        compiler_params=pltpu.CompilerParams(
            dimension_semantics=("parallel",),       # shard batch across TCs
            vmem_limit_bytes=32 * 1024 * 1024,       # safe on v5e/v6e/v7x
        ),
    )(x, noise, w1, b1, w2, b2, w3, b3)

    return out[:B, :A]


def init_actor_params(key, state_dim, action_dim, hidden1=256, hidden2=256,
                      init_w=0.003):
    """Deterministic synthetic init mirroring the PyTorch module's scheme.

    fanin_init uses fanin = weight.size(0) (== out_features in PyTorch layout);
    biases use nn.Linear's default uniform(-1/sqrt(in_features), ...).
    Weights are returned transposed to (in, out) for the kernel layout.
    """
    ks = jax.random.split(key, 6)

    def uni(k, shape, bound):
        return jax.random.uniform(k, shape, jnp.float32, -bound, bound)

    v1 = 1.0 / jnp.sqrt(hidden1)          # fanin_init with fanin = out_features
    v2 = 1.0 / jnp.sqrt(hidden2)
    w1 = uni(ks[0], (state_dim, hidden1), v1)
    w2 = uni(ks[1], (hidden1, hidden2), v2)
    w3 = uni(ks[2], (hidden2, action_dim), init_w)

    b1 = uni(ks[3], (1, hidden1), 1.0 / jnp.sqrt(state_dim))
    b2 = uni(ks[4], (1, hidden2), 1.0 / jnp.sqrt(hidden1))
    b3 = uni(ks[5], (1, action_dim), 1.0 / jnp.sqrt(hidden2))
    return (w1, b1, w2, b2, w3, b3)


if __name__ == "__main__":
    # Small shapes consistent with the module (x: (batch, state_dim)).
    batch, state_dim, action_dim = 8, 16, 8
    hidden1 = hidden2 = 256   # module defaults

    key = jax.random.PRNGKey(0)
    k_x, k_p, k_n = jax.random.split(key, 3)

    x = jax.random.normal(k_x, (batch, state_dim), jnp.float32)
    params = init_actor_params(k_p, state_dim, action_dim, hidden1, hidden2)

    # 1) Stochastic path (matches the module: N(0, 0.1^2) noise before fc3).
    out = actor_forward(x, params, noise_key=k_n, noise_scale=0.1)
    out = jax.block_until_ready(out)
    assert out.shape == (batch, action_dim)
    assert bool(jnp.all(jnp.isfinite(out)))
    assert bool(jnp.all(out >= 0.0))
    assert bool(jnp.allclose(jnp.sum(out, axis=1), 1.0, atol=5e-3))

    # Stochastic path must also match the reference math with the SAME noise.
    w1, b1, w2, b2, w3, b3 = params
    noise_full = jax.random.normal(k_n, (batch, hidden2), jnp.float32) * 0.1
    h1 = jnp.maximum(x @ w1 + b1, 0.0)
    h2 = jnp.maximum(h1 @ w2 + b2, 0.0) + noise_full
    a = jnp.abs(h2 @ w3 + b3)
    ref_n = a / jnp.maximum(jnp.sum(a, axis=1, keepdims=True), 1e-12)
    assert bool(jnp.allclose(out, ref_n, atol=5e-3, rtol=5e-3))

    # 2) Deterministic path (noise_scale=0): compare against plain JAX math.
    out0 = actor_forward(x, params, noise_key=None, noise_scale=0.0)
    out0 = jax.block_until_ready(out0)

    h1 = jnp.maximum(x @ w1 + b1, 0.0)
    h2 = jnp.maximum(h1 @ w2 + b2, 0.0)
    a = jnp.abs(h2 @ w3 + b3)
    ref = a / jnp.maximum(jnp.sum(a, axis=1, keepdims=True), 1e-12)

    assert out0.shape == (batch, action_dim)
    assert bool(jnp.allclose(out0, ref, atol=5e-3, rtol=5e-3))
    assert bool(jnp.allclose(jnp.sum(out0, axis=1), 1.0, atol=5e-3))

    print("KERNEL_OK")
</pallas_src>

<mosaic_0001>
module attributes {stable_mosaic.version = 11 : i64} {
  func.func @actor_kernel(%arg0: i32, %arg1: memref<8x16xf32, #tpu.memory_space<vmem>>, %arg2: memref<8x256xf32, #tpu.memory_space<vmem>>, %arg3: memref<16x256xf32, #tpu.memory_space<vmem>>, %arg4: memref<1x256xf32, #tpu.memory_space<vmem>>, %arg5: memref<256x256xf32, #tpu.memory_space<vmem>>, %arg6: memref<1x256xf32, #tpu.memory_space<vmem>>, %arg7: memref<256x128xf32, #tpu.memory_space<vmem>>, %arg8: memref<1x128xf32, #tpu.memory_space<vmem>>, %arg9: memref<8x128xf32, #tpu.memory_space<vmem>>) attributes {dimension_semantics = [#tpu.dimension_semantics<parallel>], iteration_bounds = array<i64: 1>, scalar_prefetch = 0 : i64, scratch_operands = 0 : i64, tpu.core_type = #tpu.core_type<tc>, window_params = [{transform_indices = @transform_0, window_bounds = array<i64: 8, 16>}, {transform_indices = @transform_1, window_bounds = array<i64: 8, 256>}, {pipeline_mode = #tpu.pipeline_mode<synchronous>, transform_indices = @transform_2, window_bounds = array<i64: 16, 256>}, {pipeline_mode = #tpu.pipeline_mode<synchronous>, transform_indices = @transform_3, window_bounds = array<i64: 1, 256>}, {pipeline_mode = #tpu.pipeline_mode<synchronous>, transform_indices = @transform_4, window_bounds = array<i64: 256, 256>}, {pipeline_mode = #tpu.pipeline_mode<synchronous>, transform_indices = @transform_5, window_bounds = array<i64: 1, 256>}, {pipeline_mode = #tpu.pipeline_mode<synchronous>, transform_indices = @transform_6, window_bounds = array<i64: 256, 128>}, {pipeline_mode = #tpu.pipeline_mode<synchronous>, transform_indices = @transform_7, window_bounds = array<i64: 1, 128>}, {transform_indices = @transform_8, window_bounds = array<i64: 8, 128>}]} {
    %c0 = arith.constant 0 : index
    %c0_0 = arith.constant 0 : index
    %0 = vector.load %arg1[%c0, %c0_0] : memref<8x16xf32, #tpu.memory_space<vmem>>, vector<8x16xf32>
    %c0_1 = arith.constant 0 : index
    %c0_2 = arith.constant 0 : index
    %1 = vector.load %arg3[%c0_1, %c0_2] : memref<16x256xf32, #tpu.memory_space<vmem>>, vector<16x256xf32>
    %cst = arith.constant dense<0.000000e+00> : vector<8x256xf32>
    %2 = tpu.matmul %0, %1, %cst {dimension_numbers = #tpu.dot_dimension_numbers<[1], [0], [0], [1], [0, 0, 1, 1], [], []>} : vector<8x16xf32>, vector<16x256xf32>, vector<8x256xf32> -> vector<8x256xf32>
    %c0_3 = arith.constant 0 : index
    %c0_4 = arith.constant 0 : index
    %3 = vector.load %arg4[%c0_3, %c0_4] : memref<1x256xf32, #tpu.memory_space<vmem>>, vector<1x256xf32>
    %4 = vector.broadcast %3 : vector<1x256xf32> to vector<8x256xf32>
    %5 = arith.addf %2, %4 : vector<8x256xf32>
    %cst_5 = arith.constant 0.000000e+00 : f32
    %6 = vector.broadcast %cst_5 : f32 to vector<8x256xf32>
    %7 = arith.maximumf %5, %6 : vector<8x256xf32>
    %c0_6 = arith.constant 0 : index
    %c0_7 = arith.constant 0 : index
    %8 = vector.load %arg5[%c0_6, %c0_7] : memref<256x256xf32, #tpu.memory_space<vmem>>, vector<256x256xf32>
    %cst_8 = arith.constant dense<0.000000e+00> : vector<8x256xf32>
    %9 = tpu.matmul %7, %8, %cst_8 {dimension_numbers = #tpu.dot_dimension_numbers<[1], [0], [0], [1], [0, 0, 1, 1], [], []>} : vector<8x256xf32>, vector<256x256xf32>, vector<8x256xf32> -> vector<8x256xf32>
    %c0_9 = arith.constant 0 : index
    %c0_10 = arith.constant 0 : index
    %10 = vector.load %arg6[%c0_9, %c0_10] : memref<1x256xf32, #tpu.memory_space<vmem>>, vector<1x256xf32>
    %11 = vector.broadcast %10 : vector<1x256xf32> to vector<8x256xf32>
    %12 = arith.addf %9, %11 : vector<8x256xf32>
    %cst_11 = arith.constant 0.000000e+00 : f32
    %13 = vector.broadcast %cst_11 : f32 to vector<8x256xf32>
    %14 = arith.maximumf %12, %13 : vector<8x256xf32>
    %c0_12 = arith.constant 0 : index
    %c0_13 = arith.constant 0 : index
    %15 = vector.load %arg2[%c0_12, %c0_13] : memref<8x256xf32, #tpu.memory_space<vmem>>, vector<8x256xf32>
    %16 = arith.addf %14, %15 : vector<8x256xf32>
    %c0_14 = arith.constant 0 : index
    %c0_15 = arith.constant 0 : index
    %17 = vector.load %arg7[%c0_14, %c0_15] : memref<256x128xf32, #tpu.memory_space<vmem>>, vector<256x128xf32>
    %cst_16 = arith.constant dense<0.000000e+00> : vector<8x128xf32>
    %18 = tpu.matmul %16, %17, %cst_16 {dimension_numbers = #tpu.dot_dimension_numbers<[1], [0], [0], [1], [0, 0, 1, 1], [], []>} : vector<8x256xf32>, vector<256x128xf32>, vector<8x128xf32> -> vector<8x128xf32>
    %c0_17 = arith.constant 0 : index
    %c0_18 = arith.constant 0 : index
    %19 = vector.load %arg8[%c0_17, %c0_18] : memref<1x128xf32, #tpu.memory_space<vmem>>, vector<1x128xf32>
    %20 = vector.broadcast %19 : vector<1x128xf32> to vector<8x128xf32>
    %21 = arith.addf %18, %20 : vector<8x128xf32>
    %22 = math.absf %21 : vector<8x128xf32>
    %cst_19 = arith.constant dense<0.000000e+00> : vector<8xf32>
    %23 = vector.multi_reduction <add>, %22, %cst_19 [1] : vector<8x128xf32> to vector<8xf32>
    %24 = vector.shape_cast %23 : vector<8xf32> to vector<8x1xf32>
    %cst_20 = arith.constant 9.99999996E-13 : f32
    %25 = vector.broadcast %cst_20 : f32 to vector<8x1xf32>
    %26 = arith.maximumf %24, %25 : vector<8x1xf32>
    %27 = vector.broadcast %26 : vector<8x1xf32> to vector<8x128xf32>
    %28 = arith.divf %22, %27 : vector<8x128xf32>
    %c0_21 = arith.constant 0 : index
    %c0_22 = arith.constant 0 : index
    %29 = vector.load %arg9[%c0_21, %c0_22] : memref<8x128xf32, #tpu.memory_space<vmem>>, vector<8x128xf32>
    tpu.vector_store %arg9[%c0_21, %c0_22], %28 {strides = array<i32>} : memref<8x128xf32, #tpu.memory_space<vmem>>, vector<8x128xf32>,
    return
  }
  func.func @transform_0(%arg0: i32) -> (i32, i32) {
    %c0_i32 = arith.constant 0 : i32
    %c0_i32_0 = arith.constant 0 : i32
    return %arg0, %c0_i32 : i32, i32
  }
  func.func @transform_1(%arg0: i32) -> (i32, i32) {
    %c0_i32 = arith.constant 0 : i32
    %c0_i32_0 = arith.constant 0 : i32
    return %arg0, %c0_i32 : i32, i32
  }
  func.func @transform_2(%arg0: i32) -> (i32, i32) {
    %c0_i32 = arith.constant 0 : i32
    %c0_i32_0 = arith.constant 0 : i32
    %c0_i32_1 = arith.constant 0 : i32
    return %c0_i32, %c0_i32_0 : i32, i32
  }
  func.func @transform_3(%arg0: i32) -> (i32, i32) {
    %c0_i32 = arith.constant 0 : i32
    %c0_i32_0 = arith.constant 0 : i32
    %c0_i32_1 = arith.constant 0 : i32
    return %c0_i32, %c0_i32_0 : i32, i32
  }
  func.func @transform_4(%arg0: i32) -> (i32, i32) {
    %c0_i32 = arith.constant 0 : i32
    %c0_i32_0 = arith.constant 0 : i32
    %c0_i32_1 = arith.constant 0 : i32
    return %c0_i32, %c0_i32_0 : i32, i32
  }
  func.func @transform_5(%arg0: i32) -> (i32, i32) {
    %c0_i32 = arith.constant 0 : i32
    %c0_i32_0 = arith.constant 0 : i32
    %c0_i32_1 = arith.constant 0 : i32
    return %c0_i32, %c0_i32_0 : i32, i32
  }
  func.func @transform_6(%arg0: i32) -> (i32, i32) {
    %c0_i32 = arith.constant 0 : i32
    %c0_i32_0 = arith.constant 0 : i32
    %c0_i32_1 = arith.constant 0 : i32
    return %c0_i32, %c0_i32_0 : i32, i32
  }
  func.func @transform_7(%arg0: i32) -> (i32, i32) {
    %c0_i32 = arith.constant 0 : i32
    %c0_i32_0 = arith.constant 0 : i32
    %c0_i32_1 = arith.constant 0 : i32
    return %c0_i32, %c0_i32_0 : i32, i32
  }
  func.func @transform_8(%arg0: i32) -> (i32, i32) {
    %c0_i32 = arith.constant 0 : i32
    %c0_i32_0 = arith.constant 0 : i32
    return %arg0, %c0_i32 : i32, i32
  }
}

</mosaic_0001>

<llo_original>
// kernel: tpu_custom_call.1
$region0: #{tpu_custom_call.1}
  #allocation0 [shape = 'u32[]', space=smem, size = 0x4, offset = 0x4, fixed_abs, tag = 'smem constant byte address 0x4 - core index']
  #allocation1 [shape = 'u32[144,128]{1,0:T(1,128)}', space=vmem, size = 0x12000, scoped, tag = 'internal scratch']
  %s0 = inlined_call_operand.hbm [shape: f32[8,16], index: 0, kind: input, shape index: {}]
  %s1 = inlined_call_operand.hbm [shape: f32[8,256], index: 1, kind: input, shape index: {}]
  %s2 = inlined_call_operand.hbm [shape: f32[16,256], index: 2, kind: input, shape index: {}]
  %s3 = inlined_call_operand.vmem [shape: f32[1,256], index: 3, kind: input, shape index: {}]
  %s4 = inlined_call_operand.hbm [shape: f32[256,256], index: 4, kind: input, shape index: {}]
  %s5 = inlined_call_operand.vmem [shape: f32[1,256], index: 5, kind: input, shape index: {}]
  %s6 = inlined_call_operand.hbm [shape: f32[256,128], index: 6, kind: input, shape index: {}]
  %s7 = inlined_call_operand.vmem [shape: f32[1,128], index: 7, kind: input, shape index: {}]
  %s8 = inlined_call_operand.hbm [shape: f32[8,128], index: 8, kind: output, shape index: {}]
  %s9 = sld [smem:[#allocation0]]
  $region62: #{tpu_custom_call.1} parent=0
    _
  %s11 = ssub.s32 1, %s9
  %s12 = scalar_select 0, %s11, %s9
  $region1: #{tpu_custom_call.1} parent=0
    #allocation2 [shape = 'u8[4096]{0}', space=vmem, size = 0x1000, scoped, tag = 'input window, operand 0, single buffered']
    #allocation3 [shape = 's32[1]{0}', space=sflag, size = 0x4, scoped, tag = 'scoped memory for tpu_custom_call.1']
    #allocation4 [shape = 's32[1]{0}', space=sflag, size = 0x4, scoped, tag = 'scoped memory for tpu_custom_call.1']
    #allocation5 [shape = 'u8[8192]{0}', space=vmem, size = 0x2000, scoped, tag = 'input window, operand 1, single buffered']
    #allocation6 [shape = 's32[1]{0}', space=sflag, size = 0x4, scoped, tag = 'scoped memory for tpu_custom_call.1']
    #allocation7 [shape = 'u8[16384]{0}', space=vmem, size = 0x4000, scoped, tag = 'input window, operand 2, single buffered']
    #allocation8 [shape = 'u8[262144]{0}', space=vmem, size = 0x40000, scoped, tag = 'input window, operand 4, single buffered']
    #allocation9 [shape = 's32[1]{0}', space=sflag, size = 0x4, scoped, tag = 'scoped memory for tpu_custom_call.1']
    #allocation10 [shape = 'u8[131072]{0}', space=vmem, size = 0x20000, scoped, tag = 'input window, operand 6, single buffered']
    #allocation11 [shape = 'u8[4096]{0}', space=vmem, size = 0x1000, scoped, tag = 'output window, operand 0, single buffered']
    %13 = vsyncpa [#allocation3], 0
    %14 = vsyncpa [#allocation6], 0
    %15 = vsyncpa [#allocation9], 0
    %16 = vsyncpa [#allocation4], 0
    // Predicated region
    $region2: #{tpu_custom_call.1} parent=1 // pred_check
      _
    $region3: #{tpu_custom_call.1} parent=1 // pred_check_branch
      %18 = sbr.rel (0) target = $region5
    $region4: #{tpu_custom_call.1} parent=1 // pred_region
      %s20 = ssub.s32 128, 128
      %21 = vsyncadd [#allocation3], %s20
      %s23 = sshll.u32 [#allocation2], 4
      %s24 = int_to_ptr.vmem [resolvable:$true] %s23
      %26 = dma.hbm_to_vmem [thread:$0]  %s0, 128, %s24, [#allocation3]
    $region5: #{tpu_custom_call.1} parent=1 // pred_fallthru
      _
    // Predicated region
    $region6: #{tpu_custom_call.1} parent=1 // pred_check
      _
    $region7: #{tpu_custom_call.1} parent=1 // pred_check_branch
      %28 = sbr.rel (0) target = $region9
    $region8: #{tpu_custom_call.1} parent=1 // pred_region
      %s30 = ssub.s32 256, 256
      %31 = vsyncadd [#allocation6], %s30
      %s33 = sshll.u32 [#allocation5], 4
      %s34 = int_to_ptr.vmem [resolvable:$true] %s33
      %36 = dma.hbm_to_vmem [thread:$0]  %s1, 256, %s34, [#allocation6]
    $region9: #{tpu_custom_call.1} parent=1 // pred_fallthru
      _
    // Predicated region
    $region10: #{tpu_custom_call.1} parent=1 // pred_check
      _
    $region11: #{tpu_custom_call.1} parent=1 // pred_check_branch
      %38 = sbr.rel (0) target = $region13
    $region12: #{tpu_custom_call.1} parent=1 // pred_region
      %s40 = ssub.s32 512, 512
      %41 = vsyncadd [#allocation6], %s40
      %s42 = sshll.u32 [#allocation7], 4
      %s43 = int_to_ptr.vmem [resolvable:$true] %s42
      %48 = dma.hbm_to_vmem [thread:$0]  %s2, 512, %s43, [#allocation6], 256, 256, 16
    $region13: #{tpu_custom_call.1} parent=1 // pred_fallthru
      _
    // Predicated region
    $region14: #{tpu_custom_call.1} parent=1 // pred_check
      _
    $region15: #{tpu_custom_call.1} parent=1 // pred_check_branch
      %50 = sbr.rel (0) target = $region17
    $region16: #{tpu_custom_call.1} parent=1 // pred_region
      _
    $region17: #{tpu_custom_call.1} parent=1 // pred_fallthru
      _
    // Predicated region
    $region18: #{tpu_custom_call.1} parent=1 // pred_check
      _
    $region19: #{tpu_custom_call.1} parent=1 // pred_check_branch
      %52 = sbr.rel (0) target = $region21
    $region20: #{tpu_custom_call.1} parent=1 // pred_region
      %s54 = ssub.s32 8192, 8192
      %55 = vsyncadd [#allocation9], %s54
      %s56 = sshll.u32 [#allocation8], 4
      %s57 = int_to_ptr.vmem [resolvable:$true] %s56
      %62 = dma.hbm_to_vmem [thread:$0]  %s4, 8192, %s57, [#allocation9], 256, 256, 16
    $region21: #{tpu_custom_call.1} parent=1 // pred_fallthru
      _
    // Predicated region
    $region22: #{tpu_custom_call.1} parent=1 // pred_check
      _
    $region23: #{tpu_custom_call.1} parent=1 // pred_check_branch
      %64 = sbr.rel (0) target = $region25
    $region24: #{tpu_custom_call.1} parent=1 // pred_region
      _
    $region25: #{tpu_custom_call.1} parent=1 // pred_fallthru
      _
    // Predicated region
    $region26: #{tpu_custom_call.1} parent=1 // pred_check
      _
    $region27: #{tpu_custom_call.1} parent=1 // pred_check_branch
      %66 = sbr.rel (0) target = $region29
    $region28: #{tpu_custom_call.1} parent=1 // pred_region
      %s68 = ssub.s32 4096, 4096
      %69 = vsyncadd [#allocation9], %s68
      %s70 = sshll.u32 [#allocation10], 4
      %s71 = int_to_ptr.vmem [resolvable:$true] %s70
      %76 = dma.hbm_to_vmem [thread:$0]  %s6, 4096, %s71, [#allocation9], 128, 128, 8
    $region29: #{tpu_custom_call.1} parent=1 // pred_fallthru
      _
    // Predicated region
    $region30: #{tpu_custom_call.1} parent=1 // pred_check
      _
    $region31: #{tpu_custom_call.1} parent=1 // pred_check_branch
      %78 = sbr.rel (0) target = $region33
    $region32: #{tpu_custom_call.1} parent=1 // pred_region
      _
    $region33: #{tpu_custom_call.1} parent=1 // pred_fallthru
      _
    // Predicated region
    $region34: #{tpu_custom_call.1} parent=1 // pred_check
      _
    $region35: #{tpu_custom_call.1} parent=1 // pred_check_branch
      %80 = sbr.rel (0) target = $region37
    $region36: #{tpu_custom_call.1} parent=1 // pred_region
      %81 = dma.done [#allocation3], 128
    $region37: #{tpu_custom_call.1} parent=1 // pred_fallthru
      _
    // Predicated region
    $region38: #{tpu_custom_call.1} parent=1 // pred_check
      _
    $region39: #{tpu_custom_call.1} parent=1 // pred_check_branch
      %83 = sbr.rel (0) target = $region41
    $region40: #{tpu_custom_call.1} parent=1 // pred_region
      %84 = dma.done [#allocation6], 256
    $region41: #{tpu_custom_call.1} parent=1 // pred_fallthru
      _
    // Predicated region
    $region42: #{tpu_custom_call.1} parent=1 // pred_check
      _
    $region43: #{tpu_custom_call.1} parent=1 // pred_check_branch
      %86 = sbr.rel (0) target = $region45
    $region44: #{tpu_custom_call.1} parent=1 // pred_region
      %87 = dma.done [#allocation6], 512
    $region45: #{tpu_custom_call.1} parent=1 // pred_fallthru
      _
    // Predicated region
    $region46: #{tpu_custom_call.1} parent=1 // pred_check
      _
    $region47: #{tpu_custom_call.1} parent=1 // pred_check_branch
      %89 = sbr.rel (0) target = $region49
    $region48: #{tpu_custom_call.1} parent=1 // pred_region
      %90 = dma.done [#allocation9], 8192
    $region49: #{tpu_custom_call.1} parent=1 // pred_fallthru
      _
    // Predicated region
    $region50: #{tpu_custom_call.1} parent=1 // pred_check
      _
    $region51: #{tpu_custom_call.1} parent=1 // pred_check_branch
      %92 = sbr.rel (0) target = $region53
    $region52: #{tpu_custom_call.1} parent=1 // pred_region
      %93 = dma.done [#allocation9], 4096
    $region53: #{tpu_custom_call.1} parent=1 // pred_fallthru
      _
    %v94 = vld [vmem:[#allocation2] sm:$0xff]
    %v95 = vld [vmem:[#allocation7] sm:$0xff]
    %v96 = vld [vmem:[#allocation7 + $0x8] sm:$0xff]
    %v97 = vld [vmem:[#allocation7 + $0x10] sm:$0xff]
    %v98 = vld [vmem:[#allocation7 + $0x18] sm:$0xff]
    %v99 = vld [vmem:[%s3] sm:$0x3]
    %v101 = vlaneseq
    %v102 = vshrl.u32 %v101, 7
    %v103 = vsub.s32 0, %v102
    %v104 = vrot.slane %v99, %v103
    %v105 = vlaneseq
    %v106 = vshrl.u32 %v105, 7
    %v107 = vsub.s32 1, %v106
    %v108 = vrot.slane %v99, %v107
    %vm111 = vcmask 130048
    %v113 = vsel %vm111, %v94, 0
    %115 = vmatprep.subr.mxu0 %v96
    %116 = vmatpush1.msra.mxu0 %v95
    %117 = vmatprep.subr.mxu0 %v98
    %118 = vmatpush1.msra.mxu0 %v97
    %119 = vmatprep.subr.mxu0 0.0
    %120 = vmatpush1.msra.mxu0 0.0
    %121 = vmatprep.subr.mxu0 0.0
    %122 = vmatpush1.msra.mxu0 0.0
    %123 = vmatprep.subr.mxu0 0.0
    %124 = vmatpush1.msra.mxu0 0.0
    %125 = vmatprep.subr.mxu0 0.0
    %126 = vmatpush1.msra.mxu0 0.0
    %127 = vmatprep.subr.mxu0 0.0
    %128 = vmatpush1.msra.mxu0 0.0
    %129 = vmatprep.subr.mxu0 0.0
    %130 = vmatpush1.msra.mxu0 0.0
    %131 = vmatprep.subr.mxu0 0.0
    %132 = vmatpush1.msra.mxu0 0.0
    %133 = vmatprep.subr.mxu0 0.0
    %134 = vmatpush1.msra.mxu0 0.0
    %135 = vmatprep.subr.mxu0 0.0
    %136 = vmatpush1.msra.mxu0 0.0
    %137 = vmatprep.subr.mxu0 0.0
    %138 = vmatpush1.msra.mxu0 0.0
    %139 = vmatprep.subr.mxu0 0.0
    %140 = vmatpush1.msra.mxu0 0.0
    %141 = vmatprep.subr.mxu0 0.0
    %142 = vmatpush1.msra.mxu0 0.0
    %143 = vmatprep.subr.mxu0 0.0
    %144 = vmatpush1.msra.mxu0 0.0
    %145 = vmatprep.subr.mxu0 0.0
    %146 = vmatpush1.msra.mxu0 0.0
    %147 = vmatprep.subr.mxu0 0.0
    %148 = vmatpush1.msra.mxu0 0.0
    %149 = vmatprep.subr.mxu0 0.0
    %150 = vmatpush1.msra.mxu0 0.0
    %151 = vmatprep.subr.mxu0 0.0
    %152 = vmatpush1.msra.mxu0 0.0
    %153 = vmatprep.subr.mxu0 0.0
    %154 = vmatpush1.msra.mxu0 0.0
    %155 = vmatprep.subr.mxu0 0.0
    %156 = vmatpush1.msra.mxu0 0.0
    %157 = vmatprep.subr.mxu0 0.0
    %158 = vmatpush1.msra.mxu0 0.0
    %159 = vmatprep.subr.mxu0 0.0
    %160 = vmatpush1.msra.mxu0 0.0
    %161 = vmatprep.subr.mxu0 0.0
    %162 = vmatpush1.msra.mxu0 0.0
    %163 = vmatprep.subr.mxu0 0.0
    %164 = vmatpush1.msra.mxu0 0.0
    %165 = vmatprep.subr.mxu0 0.0
    %166 = vmatpush1.msra.mxu0 0.0
    %167 = vmatprep.subr.mxu0 0.0
    %168 = vmatpush1.msra.mxu0 0.0
    %169 = vmatprep.subr.mxu0 0.0
    %170 = vmatpush1.msra.mxu0 0.0
    %171 = vmatprep.subr.mxu0 0.0
    %172 = vmatpush1.msra.mxu0 0.0
    %173 = vmatprep.subr.mxu0 0.0
    %174 = vmatpush1.msra.mxu0 0.0
    %175 = vmatprep.subr.mxu0 0.0
    %176 = vmatpush1.msra.mxu0 0.0
    %177 = vmatprep.subr.mxu0 0.0
    %178 = vmatpush1.msra.mxu0 0.0
    %179 = vmatprep.mubr.f32.mxu0 0.0
    %180 = vmatmul.mubr.f32.gmra.mrb[0].mxu0 %v113
    %v181 = vpop.f32.mrb[0].mxu0
    %v182 = vadd.f32 %v104, %v181
    %v183 = vpop.f32.mrb[0].mxu0
    %v184 = vadd.f32 %v108, %v183
    %185 = vdwg.mxu0
    %v186 = vmax.f32 %v182, 0.0
    %v187 = vmax.f32 %v184, 0.0
    %v188 = vld [vmem:[#allocation8] sm:$0xff]
    %v189 = vld [vmem:[#allocation8 + $0x8] sm:$0xff]
    %v190 = vld [vmem:[#allocation8 + $0x10] sm:$0xff]
    %v191 = vld [vmem:[#allocation8 + $0x18] sm:$0xff]
    %v192 = vld [vmem:[#allocation8 + $0x20] sm:$0xff]
    %v193 = vld [vmem:[#allocation8 + $0x28] sm:$0xff]
    %v194 = vld [vmem:[#allocation8 + $0x30] sm:$0xff]
    %v195 = vld [vmem:[#allocation8 + $0x38] sm:$0xff]
    %v196 = vld [vmem:[#allocation8 + $0x40] sm:$0xff]
    %v197 = vld [vmem:[#allocation8 + $0x48] sm:$0xff]
    %v198 = vld [vmem:[#allocation8 + $0x50] sm:$0xff]
    %v199 = vld [vmem:[#allocation8 + $0x58] sm:$0xff]
    %v200 = vld [vmem:[#allocation8 + $0x60] sm:$0xff]
    %v201 = vld [vmem:[#allocation8 + $0x68] sm:$0xff]
    %v202 = vld [vmem:[#allocation8 + $0x70] sm:$0xff]
    %v203 = vld [vmem:[#allocation8 + $0x78] sm:$0xff]
    %v204 = vld [vmem:[#allocation8 + $0x80] sm:$0xff]
    %v205 = vld [vmem:[#allocation8 + $0x88] sm:$0xff]
    %v206 = vld [vmem:[#allocation8 + $0x90] sm:$0xff]
    %v207 = vld [vmem:[#allocation8 + $0x98] sm:$0xff]
    %v208 = vld [vmem:[#allocation8 + $0xa0] sm:$0xff]
    %v209 = vld [vmem:[#allocation8 + $0xa8] sm:$0xff]
    %v210 = vld [vmem:[#allocation8 + $0xb0] sm:$0xff]
    %v211 = vld [vmem:[#allocation8 + $0xb8] sm:$0xff]
    %v212 = vld [vmem:[#allocation8 + $0xc0] sm:$0xff]
    %v213 = vld [vmem:[#allocation8 + $0xc8] sm:$0xff]
    %v214 = vld [vmem:[#allocation8 + $0xd0] sm:$0xff]
    %v215 = vld [vmem:[#allocation8 + $0xd8] sm:$0xff]
    %v216 = vld [vmem:[#allocation8 + $0xe0] sm:$0xff]
    %v217 = vld [vmem:[#allocation8 + $0xe8] sm:$0xff]
    %v218 = vld [vmem:[#allocation8 + $0xf0] sm:$0xff]
    %v219 = vld [vmem:[#allocation8 + $0xf8] sm:$0xff]
    %v220 = vld [vmem:[#allocation8 + $0x100] sm:$0xff]
    %v221 = vld [vmem:[#allocation8 + $0x108] sm:$0xff]
    %v222 = vld [vmem:[#allocation8 + $0x110] sm:$0xff]
    %v223 = vld [vmem:[#allocation8 + $0x118] sm:$0xff]
    %v224 = vld [vmem:[#allocation8 + $0x120] sm:$0xff]
    %v225 = vld [vmem:[#allocation8 + $0x128] sm:$0xff]
    %v226 = vld [vmem:[#allocation8 + $0x130] sm:$0xff]
    %v227 = vld [vmem:[#allocation8 + $0x138] sm:$0xff]
    %v228 = vld [vmem:[#allocation8 + $0x140] sm:$0xff]
    %v229 = vld [vmem:[#allocation8 + $0x148] sm:$0xff]
    %v230 = vld [vmem:[#allocation8 + $0x150] sm:$0xff]
    %v231 = vld [vmem:[#allocation8 + $0x158] sm:$0xff]
    %v232 = vld [vmem:[#allocation8 + $0x160] sm:$0xff]
    %v233 = vld [vmem:[#allocation8 + $0x168] sm:$0xff]
    %v234 = vld [vmem:[#allocation8 + $0x170] sm:$0xff]
    %v235 = vld [vmem:[#allocation8 + $0x178] sm:$0xff]
    %v236 = vld [vmem:[#allocation8 + $0x180] sm:$0xff]
    %v237 = vld [vmem:[#allocation8 + $0x188] sm:$0xff]
    %v238 = vld [vmem:[#allocation8 + $0x190] sm:$0xff]
    %v239 = vld [vmem:[#allocation8 + $0x198] sm:$0xff]
    %v240 = vld [vmem:[#allocation8 + $0x1a0] sm:$0xff]
    %v241 = vld [vmem:[#allocation8 + $0x1a8] sm:$0xff]
    %v242 = vld [vmem:[#allocation8 + $0x1b0] sm:$0xff]
    %v243 = vld [vmem:[#allocation8 + $0x1b8] sm:$0xff]
    %v244 = vld [vmem:[#allocation8 + $0x1c0] sm:$0xff]
    %v245 = vld [vmem:[#allocation8 + $0x1c8] sm:$0xff]
    %v246 = vld [vmem:[#allocation8 + $0x1d0] sm:$0xff]
    %v247 = vld [vmem:[#allocation8 + $0x1d8] sm:$0xff]
    %v248 = vld [vmem:[#allocation8 + $0x1e0] sm:$0xff]
    %v249 = vld [vmem:[#allocation8 + $0x1e8] sm:$0xff]
    %v250 = vld [vmem:[#allocation8 + $0x1f0] sm:$0xff]
    %v251 = vld [vmem:[#allocation8 + $0x1f8] sm:$0xff]
    %v252 = vld [vmem:[%s5] sm:$0x3]
    %v254 = vlaneseq
    %v255 = vshrl.u32 %v254, 7
    %v256 = vsub.s32 0, %v255
    %v257 = vrot.slane %v252, %v256
    %v258 = vlaneseq
    %v259 = vshrl.u32 %v258, 7
    %v260 = vsub.s32 1, %v259
    %v261 = vrot.slane %v252, %v260
    %264 = vmatprep.subr.mxu0 %v189
    %265 = vmatpush1.msra.mxu0 %v188
    %266 = vmatprep.subr.mxu0 %v191
    %267 = vmatpush1.msra.mxu0 %v190
    %268 = vmatprep.subr.mxu0 %v193
    %269 = vmatpush1.msra.mxu0 %v192
    %270 = vmatprep.subr.mxu0 %v195
    %271 = vmatpush1.msra.mxu0 %v194
    %272 = vmatprep.subr.mxu0 %v197
    %273 = vmatpush1.msra.mxu0 %v196
    %274 = vmatprep.subr.mxu0 %v199
    %275 = vmatpush1.msra.mxu0 %v198
    %276 = vmatprep.subr.mxu0 %v201
    %277 = vmatpush1.msra.mxu0 %v200
    %278 = vmatprep.subr.mxu0 %v203
    %279 = vmatpush1.msra.mxu0 %v202
    %280 = vmatprep.subr.mxu0 %v205
    %281 = vmatpush1.msra.mxu0 %v204
    %282 = vmatprep.subr.mxu0 %v207
    %283 = vmatpush1.msra.mxu0 %v206
    %284 = vmatprep.subr.mxu0 %v209
    %285 = vmatpush1.msra.mxu0 %v208
    %286 = vmatprep.subr.mxu0 %v211
    %287 = vmatpush1.msra.mxu0 %v210
    %288 = vmatprep.subr.mxu0 %v213
    %289 = vmatpush1.msra.mxu0 %v212
    %290 = vmatprep.subr.mxu0 %v215
    %291 = vmatpush1.msra.mxu0 %v214
    %292 = vmatprep.subr.mxu0 %v217
    %293 = vmatpush1.msra.mxu0 %v216
    %294 = vmatprep.subr.mxu0 %v219
    %295 = vmatpush1.msra.mxu0 %v218
    %296 = vmatprep.subr.mxu0 %v221
    %297 = vmatpush1.msra.mxu0 %v220
    %298 = vmatprep.subr.mxu0 %v223
    %299 = vmatpush1.msra.mxu0 %v222
    %300 = vmatprep.subr.mxu0 %v225
    %301 = vmatpush1.msra.mxu0 %v224
    %302 = vmatprep.subr.mxu0 %v227
    %303 = vmatpush1.msra.mxu0 %v226
    %304 = vmatprep.subr.mxu0 %v229
    %305 = vmatpush1.msra.mxu0 %v228
    %306 = vmatprep.subr.mxu0 %v231
    %307 = vmatpush1.msra.mxu0 %v230
    %308 = vmatprep.subr.mxu0 %v233
    %309 = vmatpush1.msra.mxu0 %v232
    %310 = vmatprep.subr.mxu0 %v235
    %311 = vmatpush1.msra.mxu0 %v234
    %312 = vmatprep.subr.mxu0 %v237
    %313 = vmatpush1.msra.mxu0 %v236
    %314 = vmatprep.subr.mxu0 %v239
    %315 = vmatpush1.msra.mxu0 %v238
    %316 = vmatprep.subr.mxu0 %v241
    %317 = vmatpush1.msra.mxu0 %v240
    %318 = vmatprep.subr.mxu0 %v243
    %319 = vmatpush1.msra.mxu0 %v242
    %320 = vmatprep.subr.mxu0 %v245
    %321 = vmatpush1.msra.mxu0 %v244
    %322 = vmatprep.subr.mxu0 %v247
    %323 = vmatpush1.msra.mxu0 %v246
    %324 = vmatprep.subr.mxu0 %v249
    %325 = vmatpush1.msra.mxu0 %v248
    %326 = vmatprep.subr.mxu0 %v251
    %327 = vmatpush1.msra.mxu0 %v250
    %328 = vmatprep.mubr.f32.mxu0 %v187
    %329 = vmatmul.mubr.f32.gmra.mrb[0].mxu0 %v186
    %v330 = vpop.f32.mrb[0].mxu0
    %v331 = vadd.f32 %v257, %v330
    %v332 = vpop.f32.mrb[0].mxu0
    %v333 = vadd.f32 %v261, %v332
    %334 = vdwg.mxu0
    %v335 = vmax.f32 %v331, 0.0
    %v336 = vmax.f32 %v333, 0.0
    %v337 = vld [vmem:[#allocation5] sm:$0xff]
    %v338 = vld [vmem:[#allocation5 + $0x8] sm:$0xff]
    %v339 = vadd.f32 %v335, %v337
    %v340 = vadd.f32 %v336, %v338
    %v341 = vld [vmem:[#allocation10] sm:$0xff]
    %v342 = vld [vmem:[#allocation10 + $0x8] sm:$0xff]
    %v343 = vld [vmem:[#allocation10 + $0x10] sm:$0xff]
    %v344 = vld [vmem:[#allocation10 + $0x18] sm:$0xff]
    %v345 = vld [vmem:[#allocation10 + $0x20] sm:$0xff]
    %v346 = vld [vmem:[#allocation10 + $0x28] sm:$0xff]
    %v347 = vld [vmem:[#allocation10 + $0x30] sm:$0xff]
    %v348 = vld [vmem:[#allocation10 + $0x38] sm:$0xff]
    %v349 = vld [vmem:[#allocation10 + $0x40] sm:$0xff]
    %v350 = vld [vmem:[#allocation10 + $0x48] sm:$0xff]
    %v351 = vld [vmem:[#allocation10 + $0x50] sm:$0xff]
    %v352 = vld [vmem:[#allocation10 + $0x58] sm:$0xff]
    %v353 = vld [vmem:[#allocation10 + $0x60] sm:$0xff]
    %v354 = vld [vmem:[#allocation10 + $0x68] sm:$0xff]
    %v355 = vld [vmem:[#allocation10 + $0x70] sm:$0xff]
    %v356 = vld [vmem:[#allocation10 + $0x78] sm:$0xff]
    %v357 = vld [vmem:[#allocation10 + $0x80] sm:$0xff]
    %v358 = vld [vmem:[#allocation10 + $0x88] sm:$0xff]
    %v359 = vld [vmem:[#allocation10 + $0x90] sm:$0xff]
    %v360 = vld [vmem:[#allocation10 + $0x98] sm:$0xff]
    %v361 = vld [vmem:[#allocation10 + $0xa0] sm:$0xff]
    %v362 = vld [vmem:[#allocation10 + $0xa8] sm:$0xff]
    %v363 = vld [vmem:[#allocation10 + $0xb0] sm:$0xff]
    %v364 = vld [vmem:[#allocation10 + $0xb8] sm:$0xff]
    %v365 = vld [vmem:[#allocation10 + $0xc0] sm:$0xff]
    %v366 = vld [vmem:[#allocation10 + $0xc8] sm:$0xff]
    %v367 = vld [vmem:[#allocation10 + $0xd0] sm:$0xff]
    %v368 = vld [vmem:[#allocation10 + $0xd8] sm:$0xff]
    %v369 = vld [vmem:[#allocation10 + $0xe0] sm:$0xff]
    %v370 = vld [vmem:[#allocation10 + $0xe8] sm:$0xff]
    %v371 = vld [vmem:[#allocation10 + $0xf0] sm:$0xff]
    %v372 = vld [vmem:[#allocation10 + $0xf8] sm:$0xff]
    %v373 = vld [vmem:[%s7] sm:$0x1]
    %v375 = vlaneseq
    %v376 = vshrl.u32 %v375, 7
    %v377 = vsub.s32 0, %v376
    %v378 = vrot.slane %v373, %v377
    %380 = vmatprep.subr.mxu0 0.0
    %381 = vmatpush1.msra.mxu0 %v341
    %382 = vmatprep.subr.mxu0 0.0
    %383 = vmatpush1.msra.mxu0 %v342
    %384 = vmatprep.subr.mxu0 0.0
    %385 = vmatpush1.msra.mxu0 %v343
    %386 = vmatprep.subr.mxu0 0.0
    %387 = vmatpush1.msra.mxu0 %v344
    %388 = vmatprep.subr.mxu0 0.0
    %389 = vmatpush1.msra.mxu0 %v345
    %390 = vmatprep.subr.mxu0 0.0
    %391 = vmatpush1.msra.mxu0 %v346
    %392 = vmatprep.subr.mxu0 0.0
    %393 = vmatpush1.msra.mxu0 %v347
    %394 = vmatprep.subr.mxu0 0.0
    %395 = vmatpush1.msra.mxu0 %v348
    %396 = vmatprep.subr.mxu0 0.0
    %397 = vmatpush1.msra.mxu0 %v349
    %398 = vmatprep.subr.mxu0 0.0
    %399 = vmatpush1.msra.mxu0 %v350
    %400 = vmatprep.subr.mxu0 0.0
    %401 = vmatpush1.msra.mxu0 %v351
    %402 = vmatprep.subr.mxu0 0.0
    %403 = vmatpush1.msra.mxu0 %v352
    %404 = vmatprep.subr.mxu0 0.0
    %405 = vmatpush1.msra.mxu0 %v353
    %406 = vmatprep.subr.mxu0 0.0
    %407 = vmatpush1.msra.mxu0 %v354
    %408 = vmatprep.subr.mxu0 0.0
    %409 = vmatpush1.msra.mxu0 %v355
    %410 = vmatprep.subr.mxu0 0.0
    %411 = vmatpush1.msra.mxu0 %v356
    %412 = vmatprep.subr.mxu0 0.0
    %413 = vmatpush1.msra.mxu0 %v357
    %414 = vmatprep.subr.mxu0 0.0
    %415 = vmatpush1.msra.mxu0 %v358
    %416 = vmatprep.subr.mxu0 0.0
    %417 = vmatpush1.msra.mxu0 %v359
    %418 = vmatprep.subr.mxu0 0.0
    %419 = vmatpush1.msra.mxu0 %v360
    %420 = vmatprep.subr.mxu0 0.0
    %421 = vmatpush1.msra.mxu0 %v361
    %422 = vmatprep.subr.mxu0 0.0
    %423 = vmatpush1.msra.mxu0 %v362
    %424 = vmatprep.subr.mxu0 0.0
    %425 = vmatpush1.msra.mxu0 %v363
    %426 = vmatprep.subr.mxu0 0.0
    %427 = vmatpush1.msra.mxu0 %v364
    %428 = vmatprep.subr.mxu0 0.0
    %429 = vmatpush1.msra.mxu0 %v365
    %430 = vmatprep.subr.mxu0 0.0
    %431 = vmatpush1.msra.mxu0 %v366
    %432 = vmatprep.subr.mxu0 0.0
    %433 = vmatpush1.msra.mxu0 %v367
    %434 = vmatprep.subr.mxu0 0.0
    %435 = vmatpush1.msra.mxu0 %v368
    %436 = vmatprep.subr.mxu0 0.0
    %437 = vmatpush1.msra.mxu0 %v369
    %438 = vmatprep.subr.mxu0 0.0
    %439 = vmatpush1.msra.mxu0 %v370
    %440 = vmatprep.subr.mxu0 0.0
    %441 = vmatpush1.msra.mxu0 %v371
    %442 = vmatprep.subr.mxu0 0.0
    %443 = vmatpush1.msra.mxu0 %v372
    %444 = vmatprep.mubr.f32.mxu0 %v340
    %445 = vmatmul.mubr.f32.gmra.mrb[0].mxu0 %v339
    %v446 = vpop.f32.mrb[0].mxu0
    %v447 = vadd.f32 %v378, %v446
    %v448 = vpop.f32.mrb[0].mxu0
    %449 = vdwg.mxu0
    %v450 = vand.u32 2147483647, %v447
    %451 = vadd.xlane.f32.xlu0 %v450
    %v452 = vpop.xlane.xlu0 %451
    %v453 = vmax.f32 %v452, 1e-12
    %v454 = vrcp.pop %v453
    %v455 = vmul.f32 %v450, %v454
    %456 = vst [vmem:[#allocation11] sm:$0xff] %v455
    // Predicated region
    $region54: #{tpu_custom_call.1} parent=1 // pred_check
      _
    $region55: #{tpu_custom_call.1} parent=1 // pred_check_branch
      %458 = sbr.rel (0) target = $region57
    $region56: #{tpu_custom_call.1} parent=1 // pred_region
      %s460 = ssub.s32 128, 128
      %461 = vsyncadd [#allocation4], %s460
      %s463 = sshll.u32 [#allocation11], 4
      %s464 = int_to_ptr.vmem [resolvable:$true] %s463
      %466 = dma.vmem_to_hbm [thread:$0]  %s464, 128, %s8, [#allocation4]
    $region57: #{tpu_custom_call.1} parent=1 // pred_fallthru
      _
    // Predicated region
    $region58: #{tpu_custom_call.1} parent=1 // pred_check
      _
    $region59: #{tpu_custom_call.1} parent=1 // pred_check_branch
      %468 = sbr.rel (0) target = $region61
    $region60: #{tpu_custom_call.1} parent=1 // pred_region
      %469 = dma.done [#allocation4], 128
    $region61: #{tpu_custom_call.1} parent=1 // pred_fallthru
      _
    %470 = vsyncpa [#allocation3], 1
    %471 = vsyncpa [#allocation6], 1
    %472 = vsyncpa [#allocation9], 1
    %473 = vsyncpa [#allocation4], 1

</llo_original>
